<compile_context>
chip_gen: v7x
topology: tpu7x:2x2x1
jax: 0.10.0
libtpu: 0.0.40
codegen_flags: <defaults>
</compile_context>

<pallas_src>
import math
import functools

import jax
import jax.numpy as jnp
from jax import lax
from jax.experimental import pallas as pl
from jax.experimental.pallas import tpu as pltpu


# Contract over the last axis of both operands: (tm, tk) x (tn, tk) -> (tm, tn).
_TRANS_B_DIMS = (((1,), (1,)), ((), ()))


def _noisy_linear_kernel(x_ref, wmu_ref, wsig_ref, ein_ref, eout_ref, beff_ref,
                         o_ref):
    """One (i, j, k) grid step.

    o_ref is the resident f32 accumulator (its block index is constant across
    the K axis).  It is seeded with the effective bias at k == 0, so no VMEM
    scratch and no finalize copy are needed.
    """
    k = pl.program_id(2)

    @pl.when(k == 0)
    def _init():
        o_ref[...] = jnp.broadcast_to(beff_ref[...], o_ref.shape)

    x = x_ref[...]                          # (tm, tk)  compute dtype (bf16 default)
    eout = eout_ref[...]                    # (1, tn)   f32

    # mu path: x @ W_mu.T  (row-major weight tile, contraction over the shared
    # 'in' axis -> no transpose materialized in VMEM).
    acc = lax.dot_general(x, wmu_ref[...], _TRANS_B_DIMS,
                          preferred_element_type=jnp.float32)
    # sigma path with factorized noise: eps_out * ((x * eps_in) @ W_sigma.T).
    # Tiny elementwise work sits in VALU slack under the MXU; the eps_in scale
    # is done in f32 and cast back to the matmul dtype right before the dot.
    xs = (x.astype(jnp.float32) * ein_ref[...]).astype(x.dtype)
    acc += eout * lax.dot_general(xs, wsig_ref[...], _TRANS_B_DIMS,
                                  preferred_element_type=jnp.float32)
    o_ref[...] += acc


def _round_up(x, m):
    return ((x + m - 1) // m) * m


def _pick_lane_tile(dim_padded, cap):
    """Largest multiple of 128 <= cap that divides the (128-padded) dim."""
    t = min(cap, dim_padded)
    t -= t % 128
    t = max(t, 128)
    while dim_padded % t:
        t -= 128
    return t


def _pick_tiles(b, kp, np_):
    """MXU / lane aligned tiles; weights streamed once when B <= 512."""
    bp = _round_up(max(b, 1), 8)
    if bp <= 512:
        tm = bp                         # whole batch in one M tile
    else:
        tm = 512
        bp = _round_up(b, tm)

    tk = _pick_lane_tile(kp, 1024)
    tn = _pick_lane_tile(np_, 1024)

    # v7x megacore: if the M grid collapsed to one tile, keep >= 2 N tiles so
    # the second TensorCore gets disjoint weight rows (no duplicated streaming).
    if bp == tm and tn == np_ and np_ >= 256:
        tn = _pick_lane_tile(np_, np_ // 2)

    return tm, tk, tn, bp


def _vmem_limit_bytes(tm, tk, tn, itemsize):
    # Double-buffered inputs + resident f32 output tile, with generous headroom,
    # clamped to a range that is safe on every generation (v5e scoped default is
    # only 16 MiB; v7x physical VMEM is 64 MiB).
    est = 2 * (tm * tk + 2 * tn * tk) * itemsize        # x, W_mu, W_sigma
    est += 2 * (8 * tk + 2 * 8 * tn) * 4                # (1, *) f32 rows (sublane-padded)
    est += 2 * tm * tn * 4                              # f32 output accumulator
    return int(min(max(2 * est, 32 * 2**20), 48 * 2**20))


def prepare_noisy_linear_params(weight_mu, weight_sigma, bias_mu, bias_sigma,
                                eps_in, eps_out, compute_dtype=jnp.bfloat16):
    """Cast + lane-pad the weight-side operands ONCE (per reset_noise()).

    Reuse the returned tuple across forward calls so the (N, K) matrices are
    not re-cast / re-padded (re-read + re-written in HBM) on every call.
    """
    n, k = weight_mu.shape
    kp = _round_up(k, 128)
    np_ = _round_up(n, 128)

    def pad2(a, rows, cols, dtype):
        a = a.astype(dtype)
        r, c = a.shape
        if r == rows and c == cols:
            return a
        return jnp.pad(a, ((0, rows - r), (0, cols - c)))

    wmu = pad2(weight_mu, np_, kp, compute_dtype)
    wsig = pad2(weight_sigma, np_, kp, compute_dtype)
    ein = pad2(eps_in.reshape(1, k), 1, kp, jnp.float32)
    eout = pad2(eps_out.reshape(1, n), 1, np_, jnp.float32)
    beff = pad2((bias_mu + bias_sigma * eps_out).reshape(1, n), 1, np_,
                jnp.float32)
    return (wmu, wsig, ein, eout, beff)


@functools.partial(jax.jit,
                   static_argnames=("out_features", "tiles", "force_pallas"))
def noisy_linear_prepared(x, wmu_p, wsig_p, ein_p, eout_p, beff_p, *,
                          out_features, tiles=None, force_pallas=False):
    """y = x @ (W_mu + W_sigma * outer(eps_out, eps_in)).T + b_mu + b_sigma*eps_out."""
    B, K = x.shape
    Np, Kp = wmu_p.shape
    cd = wmu_p.dtype
    orig_dtype = x.dtype

    # Only the activation is cast / lane-padded per call (zero padding is exact:
    # padded K columns contribute 0; padded N columns are sliced off below).
    xlp = x.astype(cd)
    if Kp != K:
        xlp = jnp.pad(xlp, ((0, 0), (0, Kp - K)))

    # Tiny-layer fast path: pallas_call fixed overhead dwarfs the actual work.
    if not force_pallas and tiles is None and B * Np * Kp < (1 << 20):
        y = lax.dot_general(xlp, wmu_p, _TRANS_B_DIMS,
                            preferred_element_type=jnp.float32)
        xs = (xlp.astype(jnp.float32) * ein_p).astype(cd)
        y = y + eout_p * lax.dot_general(xs, wsig_p, _TRANS_B_DIMS,
                                         preferred_element_type=jnp.float32)
        y = y + beff_p
        return y[:, :out_features].astype(orig_dtype)

    if tiles is None:
        tm, tk, tn, Bp = _pick_tiles(B, Kp, Np)
    else:
        tm, tk, tn = tiles
        Bp = _round_up(B, tm)
    assert Kp % tk == 0 and Np % tn == 0 and Bp % tm == 0

    if Bp != B:
        xlp = jnp.pad(xlp, ((0, Bp - B), (0, 0)))

    grid = (Bp // tm, Np // tn, Kp // tk)

    out = pl.pallas_call(
        _noisy_linear_kernel,
        out_shape=jax.ShapeDtypeStruct((Bp, Np), jnp.float32),
        grid_spec=pltpu.PrefetchScalarGridSpec(
            num_scalar_prefetch=0,
            grid=grid,
            in_specs=[
                pl.BlockSpec((tm, tk), lambda i, j, k: (i, k)),   # x
                pl.BlockSpec((tn, tk), lambda i, j, k: (j, k)),   # W_mu
                pl.BlockSpec((tn, tk), lambda i, j, k: (j, k)),   # W_sigma
                pl.BlockSpec((1, tk),  lambda i, j, k: (0, k)),   # eps_in
                pl.BlockSpec((1, tn),  lambda i, j, k: (0, j)),   # eps_out
                pl.BlockSpec((1, tn),  lambda i, j, k: (0, j)),   # b_eff
            ],
            out_specs=pl.BlockSpec((tm, tn), lambda i, j, k: (i, j)),
        ),
        compiler_params=pltpu.CompilerParams(
            dimension_semantics=("parallel", "parallel", "arbitrary"),
            vmem_limit_bytes=_vmem_limit_bytes(tm, tk, tn,
                                               jnp.dtype(cd).itemsize)),
    )(xlp, wmu_p, wsig_p, ein_p, eout_p, beff_p)

    return out[:B, :out_features].astype(orig_dtype)


def noisy_linear(x, weight_mu, weight_sigma, bias_mu, bias_sigma, eps_in,
                 eps_out, *, compute_dtype=jnp.bfloat16, tiles=None,
                 force_pallas=False):
    """Convenience one-shot forward.  For repeated forwards with the same noise,
    call prepare_noisy_linear_params() once and reuse the prepared operands."""
    prep = prepare_noisy_linear_params(weight_mu, weight_sigma, bias_mu,
                                       bias_sigma, eps_in, eps_out,
                                       compute_dtype)
    return noisy_linear_prepared(x, *prep, out_features=weight_mu.shape[0],
                                 tiles=tiles, force_pallas=force_pallas)


def scale_noise(key, size):
    """Factorized gaussian noise: sign(x) * sqrt(|x|), x ~ N(0, 1)."""
    v = jax.random.normal(key, (size,), dtype=jnp.float32)
    return jnp.sign(v) * jnp.sqrt(jnp.abs(v))


def init_noisy_linear_params(key, in_features, out_features, std_init=0.5):
    """Mirrors NoisyLinear.reset_parameters() + reset_noise() (factorized form)."""
    k_wmu, k_bmu, k_ein, k_eout = jax.random.split(key, 4)
    mu_range = 1.0 / math.sqrt(in_features)

    weight_mu = jax.random.uniform(
        k_wmu, (out_features, in_features), jnp.float32,
        minval=-mu_range, maxval=mu_range)
    weight_sigma = jnp.full((out_features, in_features),
                            std_init / math.sqrt(in_features), jnp.float32)
    bias_mu = jax.random.uniform(
        k_bmu, (out_features,), jnp.float32, minval=-mu_range, maxval=mu_range)
    bias_sigma = jnp.full((out_features,),
                          std_init / math.sqrt(out_features), jnp.float32)

    eps_in = scale_noise(k_ein, in_features)     # weight_epsilon = outer(eps_out, eps_in)
    eps_out = scale_noise(k_eout, out_features)  # bias_epsilon   = eps_out

    return weight_mu, weight_sigma, bias_mu, bias_sigma, eps_in, eps_out


if __name__ == "__main__":
    key = jax.random.PRNGKey(0)
    k_params, k_x = jax.random.split(key)

    # ---- small example matching the module (batch=8, in=32, out=16) ----
    B, in_features, out_features = 8, 32, 16
    params = init_noisy_linear_params(k_params, in_features, out_features)
    weight_mu, weight_sigma, bias_mu, bias_sigma, eps_in, eps_out = params
    x = jax.random.normal(k_x, (B, in_features), dtype=jnp.float32)

    # Force the Pallas path (this tiny shape would otherwise take the XLA fast path).
    out = jax.block_until_ready(noisy_linear(x, *params, force_pallas=True))
    assert out.shape == (B, out_features)
    assert out.dtype == x.dtype

    # Reference 1: exact module math in f32 (weight_epsilon = outer(eps_out, eps_in)).
    weight_epsilon = jnp.outer(eps_out, eps_in)
    ref_f32 = (x @ (weight_mu + weight_sigma * weight_epsilon).T
               + (bias_mu + bias_sigma * eps_out))

    # Reference 2: same math with the kernel's bf16 operand cast -> tight bound,
    # so the (deliberate) bf16 streaming error is measured explicitly.
    cd = jnp.bfloat16
    x_lp, wmu_lp, wsig_lp = x.astype(cd), weight_mu.astype(cd), weight_sigma.astype(cd)
    ref_lp = (jnp.dot(x_lp, wmu_lp.T, preferred_element_type=jnp.float32)
              + eps_out * jnp.dot((x_lp.astype(jnp.float32) * eps_in).astype(cd),
                                  wsig_lp.T, preferred_element_type=jnp.float32)
              + (bias_mu + bias_sigma * eps_out))

    assert jnp.allclose(out, ref_lp, atol=1e-3, rtol=1e-3), \
        f"bf16-ref max abs err = {jnp.max(jnp.abs(out - ref_lp))}"
    assert jnp.allclose(out, ref_f32, atol=5e-2, rtol=5e-2), \
        f"f32-ref max abs err = {jnp.max(jnp.abs(out - ref_f32))}"

    # ---- multi-tile grid with a real K reduction (forced small tiles) ----
    B2, K2, N2 = 16, 256, 256
    k2, k3 = jax.random.split(k_x)
    params2 = init_noisy_linear_params(k2, K2, N2)
    x2 = jax.random.normal(k3, (B2, K2), dtype=jnp.float32)
    out2 = jax.block_until_ready(
        noisy_linear(x2, *params2, tiles=(16, 128, 128), force_pallas=True))
    wmu2, wsig2, bmu2, bsig2, ein2, eout2 = params2
    x2_lp, wmu2_lp, wsig2_lp = x2.astype(cd), wmu2.astype(cd), wsig2.astype(cd)
    ref2_lp = (jnp.dot(x2_lp, wmu2_lp.T, preferred_element_type=jnp.float32)
               + eout2 * jnp.dot((x2_lp.astype(jnp.float32) * ein2).astype(cd),
                                 wsig2_lp.T, preferred_element_type=jnp.float32)
               + (bmu2 + bsig2 * eout2))
    ref2_f32 = x2 @ (wmu2 + wsig2 * jnp.outer(eout2, ein2)).T + (bmu2 + bsig2 * eout2)
    assert jnp.allclose(out2, ref2_lp, atol=1e-3, rtol=1e-3), \
        f"bf16-ref max abs err = {jnp.max(jnp.abs(out2 - ref2_lp))}"
    assert jnp.allclose(out2, ref2_f32, atol=5e-2, rtol=5e-2), \
        f"f32-ref max abs err = {jnp.max(jnp.abs(out2 - ref2_f32))}"

    # ---- the auto-selected tiny-layer XLA fast path must agree too ----
    out_fast = jax.block_until_ready(noisy_linear(x, *params))
    assert jnp.allclose(out_fast, ref_f32, atol=5e-2, rtol=5e-2)

    print("KERNEL_OK")
</pallas_src>

<mosaic_0001>
module attributes {stable_mosaic.version = 11 : i64} {
  func.func @_noisy_linear_kernel(%arg0: i32, %arg1: i32, %arg2: i32, %arg3: memref<8x128xbf16, #tpu.memory_space<vmem>>, %arg4: memref<128x128xbf16, #tpu.memory_space<vmem>>, %arg5: memref<128x128xbf16, #tpu.memory_space<vmem>>, %arg6: memref<1x128xf32, #tpu.memory_space<vmem>>, %arg7: memref<1x128xf32, #tpu.memory_space<vmem>>, %arg8: memref<1x128xf32, #tpu.memory_space<vmem>>, %arg9: memref<8x128xf32, #tpu.memory_space<vmem>>) attributes {dimension_semantics = [#tpu.dimension_semantics<parallel>, #tpu.dimension_semantics<parallel>, #tpu.dimension_semantics<arbitrary>], iteration_bounds = array<i64: 1, 1, 1>, scalar_prefetch = 0 : i64, scratch_operands = 0 : i64, tpu.core_type = #tpu.core_type<tc>, window_params = [{transform_indices = @transform_0, window_bounds = array<i64: 8, 128>}, {transform_indices = @transform_1, window_bounds = array<i64: 128, 128>}, {transform_indices = @transform_2, window_bounds = array<i64: 128, 128>}, {transform_indices = @transform_3, window_bounds = array<i64: 1, 128>}, {transform_indices = @transform_4, window_bounds = array<i64: 1, 128>}, {transform_indices = @transform_5, window_bounds = array<i64: 1, 128>}, {transform_indices = @transform_6, window_bounds = array<i64: 8, 128>}]} {
    %c0_i32 = arith.constant 0 : i32
    %0 = arith.cmpi eq, %arg2, %c0_i32 : i32
    %1 = arith.extui %0 : i1 to i32
    %c0_i32_0 = arith.constant 0 : i32
    %2 = arith.cmpi ne, %1, %c0_i32_0 : i32
    scf.if %2 {
      %c0_15 = arith.constant 0 : index
      %c0_16 = arith.constant 0 : index
      %20 = vector.load %arg8[%c0_15, %c0_16] : memref<1x128xf32, #tpu.memory_space<vmem>>, vector<1x128xf32>
      %21 = vector.shape_cast %20 : vector<1x128xf32> to vector<1x128xf32>
      %22 = vector.broadcast %21 : vector<1x128xf32> to vector<8x128xf32>
      %c0_17 = arith.constant 0 : index
      %c0_18 = arith.constant 0 : index
      %23 = vector.load %arg9[%c0_17, %c0_18] : memref<8x128xf32, #tpu.memory_space<vmem>>, vector<8x128xf32>
      tpu.vector_store %arg9[%c0_17, %c0_18], %22 {strides = array<i32>} : memref<8x128xf32, #tpu.memory_space<vmem>>, vector<8x128xf32>,
    } else {
    }
    %c0 = arith.constant 0 : index
    %c0_1 = arith.constant 0 : index
    %3 = vector.load %arg3[%c0, %c0_1] : memref<8x128xbf16, #tpu.memory_space<vmem>>, vector<8x128xbf16>
    %c0_2 = arith.constant 0 : index
    %c0_3 = arith.constant 0 : index
    %4 = vector.load %arg7[%c0_2, %c0_3] : memref<1x128xf32, #tpu.memory_space<vmem>>, vector<1x128xf32>
    %c0_4 = arith.constant 0 : index
    %c0_5 = arith.constant 0 : index
    %5 = vector.load %arg4[%c0_4, %c0_5] : memref<128x128xbf16, #tpu.memory_space<vmem>>, vector<128x128xbf16>
    %cst = arith.constant dense<0.000000e+00> : vector<8x128xf32>
    %6 = tpu.matmul %3, %5, %cst {dimension_numbers = #tpu.dot_dimension_numbers<[1], [1], [0], [0], [0, 0, 1, 0], [], []>} : vector<8x128xbf16>, vector<128x128xbf16>, vector<8x128xf32> -> vector<8x128xf32>
    %7 = arith.extf %3 : vector<8x128xbf16> to vector<8x128xf32>
    %c0_6 = arith.constant 0 : index
    %c0_7 = arith.constant 0 : index
    %8 = vector.load %arg6[%c0_6, %c0_7] : memref<1x128xf32, #tpu.memory_space<vmem>>, vector<1x128xf32>
    %9 = vector.broadcast %8 : vector<1x128xf32> to vector<8x128xf32>
    %10 = arith.mulf %7, %9 : vector<8x128xf32>
    %11 = arith.truncf %10 : vector<8x128xf32> to vector<8x128xbf16>
    %c0_8 = arith.constant 0 : index
    %c0_9 = arith.constant 0 : index
    %12 = vector.load %arg5[%c0_8, %c0_9] : memref<128x128xbf16, #tpu.memory_space<vmem>>, vector<128x128xbf16>
    %cst_10 = arith.constant dense<0.000000e+00> : vector<8x128xf32>
    %13 = tpu.matmul %11, %12, %cst_10 {dimension_numbers = #tpu.dot_dimension_numbers<[1], [1], [0], [0], [0, 0, 1, 0], [], []>} : vector<8x128xbf16>, vector<128x128xbf16>, vector<8x128xf32> -> vector<8x128xf32>
    %14 = vector.broadcast %4 : vector<1x128xf32> to vector<8x128xf32>
    %15 = arith.mulf %14, %13 : vector<8x128xf32>
    %16 = arith.addf %6, %15 : vector<8x128xf32>
    %c0_11 = arith.constant 0 : index
    %c0_12 = arith.constant 0 : index
    %17 = vector.load %arg9[%c0_11, %c0_12] : memref<8x128xf32, #tpu.memory_space<vmem>>, vector<8x128xf32>
    %18 = arith.addf %17, %16 : vector<8x128xf32>
    %c0_13 = arith.constant 0 : index
    %c0_14 = arith.constant 0 : index
    %19 = vector.load %arg9[%c0_13, %c0_14] : memref<8x128xf32, #tpu.memory_space<vmem>>, vector<8x128xf32>
    tpu.vector_store %arg9[%c0_13, %c0_14], %18 {strides = array<i32>} : memref<8x128xf32, #tpu.memory_space<vmem>>, vector<8x128xf32>,
    return
  }
  func.func @transform_0(%arg0: i32, %arg1: i32, %arg2: i32) -> (i32, i32) {
    %c0_i32 = arith.constant 0 : i32
    return %arg0, %arg2 : i32, i32
  }
  func.func @transform_1(%arg0: i32, %arg1: i32, %arg2: i32) -> (i32, i32) {
    %c0_i32 = arith.constant 0 : i32
    return %arg1, %arg2 : i32, i32
  }
  func.func @transform_2(%arg0: i32, %arg1: i32, %arg2: i32) -> (i32, i32) {
    %c0_i32 = arith.constant 0 : i32
    return %arg1, %arg2 : i32, i32
  }
  func.func @transform_3(%arg0: i32, %arg1: i32, %arg2: i32) -> (i32, i32) {
    %c0_i32 = arith.constant 0 : i32
    %c0_i32_0 = arith.constant 0 : i32
    return %c0_i32, %arg2 : i32, i32
  }
  func.func @transform_4(%arg0: i32, %arg1: i32, %arg2: i32) -> (i32, i32) {
    %c0_i32 = arith.constant 0 : i32
    %c0_i32_0 = arith.constant 0 : i32
    return %c0_i32, %arg1 : i32, i32
  }
  func.func @transform_5(%arg0: i32, %arg1: i32, %arg2: i32) -> (i32, i32) {
    %c0_i32 = arith.constant 0 : i32
    %c0_i32_0 = arith.constant 0 : i32
    return %c0_i32, %arg1 : i32, i32
  }
  func.func @transform_6(%arg0: i32, %arg1: i32, %arg2: i32) -> (i32, i32) {
    %c0_i32 = arith.constant 0 : i32
    return %arg0, %arg1 : i32, i32
  }
}

</mosaic_0001>

<llo_original>
// kernel: noisy_linear_prepared.1
$region0: #{noisy_linear_prepared.1}
  #allocation0 [shape = 'u32[]', space=smem, size = 0x4, offset = 0x4, fixed_abs, tag = 'smem constant byte address 0x4 - core index']
  #allocation1 [shape = 'u32[144,128]{1,0:T(1,128)}', space=vmem, size = 0x12000, scoped, tag = 'internal scratch']
  %s0 = inlined_call_operand.vmem [shape: bf16[8,128], index: 0, kind: input, shape index: {}]
  %s1 = inlined_call_operand.hbm [shape: bf16[128,128], index: 1, kind: input, shape index: {}]
  %s2 = inlined_call_operand.hbm [shape: bf16[128,128], index: 2, kind: input, shape index: {}]
  %s3 = inlined_call_operand.vmem [shape: f32[1,128], index: 3, kind: input, shape index: {}]
  %s4 = inlined_call_operand.vmem [shape: f32[1,128], index: 4, kind: input, shape index: {}]
  %s5 = inlined_call_operand.vmem [shape: f32[1,128], index: 5, kind: input, shape index: {}]
  %s6 = inlined_call_operand.hbm [shape: f32[8,128], index: 6, kind: output, shape index: {}]
  %s7 = sld [smem:[#allocation0]]
  $region46: #{noisy_linear_prepared.1} parent=0
    _
  %s9 = ssub.s32 1, %s7
  %s10 = scalar_select 0, %s9, %s7
  $region1: #{noisy_linear_prepared.1} parent=0
    #allocation2 [shape = 'u8[32768]{0}', space=vmem, size = 0x8000, scoped, tag = 'input window, operand 1, single buffered']
    #allocation3 [shape = 's32[1]{0}', space=sflag, size = 0x4, scoped, tag = 'scoped memory for noisy_linear_prepared.1']
    #allocation4 [shape = 's32[1]{0}', space=sflag, size = 0x4, scoped, tag = 'scoped memory for noisy_linear_prepared.1']
    #allocation5 [shape = 'u8[32768]{0}', space=vmem, size = 0x8000, scoped, tag = 'input window, operand 2, single buffered']
    #allocation6 [shape = 's32[1]{0}', space=sflag, size = 0x4, scoped, tag = 'scoped memory for noisy_linear_prepared.1']
    #allocation7 [shape = 'u8[4096]{0}', space=vmem, size = 0x1000, scoped, tag = 'output window, operand 0, single buffered']
    %11 = vsyncpa [#allocation3], 0
    %12 = vsyncpa [#allocation6], 0
    %13 = vsyncpa [#allocation4], 0
    // Predicated region
    $region2: #{noisy_linear_prepared.1} parent=1 // pred_check
      _
    $region3: #{noisy_linear_prepared.1} parent=1 // pred_check_branch
      %15 = sbr.rel (0) target = $region5
    $region4: #{noisy_linear_prepared.1} parent=1 // pred_region
      _
    $region5: #{noisy_linear_prepared.1} parent=1 // pred_fallthru
      _
    // Predicated region
    $region6: #{noisy_linear_prepared.1} parent=1 // pred_check
      _
    $region7: #{noisy_linear_prepared.1} parent=1 // pred_check_branch
      %17 = sbr.rel (0) target = $region9
    $region8: #{noisy_linear_prepared.1} parent=1 // pred_region
      %s19 = ssub.s32 1024, 1024
      %20 = vsyncadd [#allocation3], %s19
      %s21 = sshll.u32 [#allocation2], 4
      %s22 = int_to_ptr.vmem [resolvable:$true] %s21
      %27 = dma.hbm_to_vmem [thread:$0]  %s1, 1024, %s22, [#allocation3], 64, 64, 4
    $region9: #{noisy_linear_prepared.1} parent=1 // pred_fallthru
      _
    // Predicated region
    $region10: #{noisy_linear_prepared.1} parent=1 // pred_check
      _
    $region11: #{noisy_linear_prepared.1} parent=1 // pred_check_branch
      %29 = sbr.rel (0) target = $region13
    $region12: #{noisy_linear_prepared.1} parent=1 // pred_region
      %s31 = ssub.s32 1024, 1024
      %32 = vsyncadd [#allocation6], %s31
      %s33 = sshll.u32 [#allocation5], 4
      %s34 = int_to_ptr.vmem [resolvable:$true] %s33
      %39 = dma.hbm_to_vmem [thread:$0]  %s2, 1024, %s34, [#allocation6], 64, 64, 4
    $region13: #{noisy_linear_prepared.1} parent=1 // pred_fallthru
      _
    // Predicated region
    $region14: #{noisy_linear_prepared.1} parent=1 // pred_check
      _
    $region15: #{noisy_linear_prepared.1} parent=1 // pred_check_branch
      %41 = sbr.rel (0) target = $region17
    $region16: #{noisy_linear_prepared.1} parent=1 // pred_region
      _
    $region17: #{noisy_linear_prepared.1} parent=1 // pred_fallthru
      _
    // Predicated region
    $region18: #{noisy_linear_prepared.1} parent=1 // pred_check
      _
    $region19: #{noisy_linear_prepared.1} parent=1 // pred_check_branch
      %43 = sbr.rel (0) target = $region21
    $region20: #{noisy_linear_prepared.1} parent=1 // pred_region
      _
    $region21: #{noisy_linear_prepared.1} parent=1 // pred_fallthru
      _
    // Predicated region
    $region22: #{noisy_linear_prepared.1} parent=1 // pred_check
      _
    $region23: #{noisy_linear_prepared.1} parent=1 // pred_check_branch
      %45 = sbr.rel (0) target = $region25
    $region24: #{noisy_linear_prepared.1} parent=1 // pred_region
      _
    $region25: #{noisy_linear_prepared.1} parent=1 // pred_fallthru
      _
    // Predicated region
    $region26: #{noisy_linear_prepared.1} parent=1 // pred_check
      _
    $region27: #{noisy_linear_prepared.1} parent=1 // pred_check_branch
      %47 = sbr.rel (0) target = $region29
    $region28: #{noisy_linear_prepared.1} parent=1 // pred_region
      %48 = dma.done [#allocation3], 1024
    $region29: #{noisy_linear_prepared.1} parent=1 // pred_fallthru
      _
    // Predicated region
    $region30: #{noisy_linear_prepared.1} parent=1 // pred_check
      _
    $region31: #{noisy_linear_prepared.1} parent=1 // pred_check_branch
      %50 = sbr.rel (0) target = $region33
    $region32: #{noisy_linear_prepared.1} parent=1 // pred_region
      %51 = dma.done [#allocation6], 1024
    $region33: #{noisy_linear_prepared.1} parent=1 // pred_fallthru
      _
    %p53 = scmp.eq.s32.totalorder 0, 0
    // Predicated region
    $region34: #{noisy_linear_prepared.1} parent=1 // pred_check
      %p54 = pneg %p53
    $region35: #{noisy_linear_prepared.1} parent=1 // pred_check_branch
      %56 = sbr.rel (%p54) target = $region37
    $region36: #{noisy_linear_prepared.1} parent=1 // pred_region
      %v57 = vld [vmem:[%s5] sm:$0x1]
      %v59 = vlaneseq
      %v60 = vshrl.u32 %v59, 7
      %v61 = vsub.s32 0, %v60
      %v62 = vrot.slane %v57, %v61
      %64 = vst [vmem:[#allocation7] sm:$0xff] %v62
    $region37: #{noisy_linear_prepared.1} parent=1 // pred_fallthru
      _
    %v65 = vld [vmem:[%s0] sm:$0xf]
    %v66 = vld [vmem:[%s4] sm:$0x1]
    %v67 = vld [vmem:[#allocation2] sm:$0xf]
    %v68 = vld [vmem:[#allocation2 + $0x4] sm:$0xf]
    %v69 = vld [vmem:[#allocation2 + $0x8] sm:$0xf]
    %v70 = vld [vmem:[#allocation2 + $0xc] sm:$0xf]
    %v71 = vld [vmem:[#allocation2 + $0x10] sm:$0xf]
    %v72 = vld [vmem:[#allocation2 + $0x14] sm:$0xf]
    %v73 = vld [vmem:[#allocation2 + $0x18] sm:$0xf]
    %v74 = vld [vmem:[#allocation2 + $0x1c] sm:$0xf]
    %v75 = vld [vmem:[#allocation2 + $0x20] sm:$0xf]
    %v76 = vld [vmem:[#allocation2 + $0x24] sm:$0xf]
    %v77 = vld [vmem:[#allocation2 + $0x28] sm:$0xf]
    %v78 = vld [vmem:[#allocation2 + $0x2c] sm:$0xf]
    %v79 = vld [vmem:[#allocation2 + $0x30] sm:$0xf]
    %v80 = vld [vmem:[#allocation2 + $0x34] sm:$0xf]
    %v81 = vld [vmem:[#allocation2 + $0x38] sm:$0xf]
    %v82 = vld [vmem:[#allocation2 + $0x3c] sm:$0xf]
    %v83 = vunpack.c.l.bf16 %v65
    %v84 = vld [vmem:[%s3] sm:$0x1]
    %v86 = vlaneseq
    %v87 = vshrl.u32 %v86, 7
    %v88 = vsub.s32 0, %v87
    %v89 = vrot.slane %v84, %v88
    %v91 = vmul.f32 %v83, %v89
    %v92 = vpack.c.bf16 %v91, %v91
    %v93 = vld [vmem:[#allocation5] sm:$0xf]
    %v94 = vld [vmem:[#allocation5 + $0x4] sm:$0xf]
    %v95 = vld [vmem:[#allocation5 + $0x8] sm:$0xf]
    %v96 = vld [vmem:[#allocation5 + $0xc] sm:$0xf]
    %v97 = vld [vmem:[#allocation5 + $0x10] sm:$0xf]
    %v98 = vld [vmem:[#allocation5 + $0x14] sm:$0xf]
    %v99 = vld [vmem:[#allocation5 + $0x18] sm:$0xf]
    %v100 = vld [vmem:[#allocation5 + $0x1c] sm:$0xf]
    %v101 = vld [vmem:[#allocation5 + $0x20] sm:$0xf]
    %v102 = vld [vmem:[#allocation5 + $0x24] sm:$0xf]
    %v103 = vld [vmem:[#allocation5 + $0x28] sm:$0xf]
    %v104 = vld [vmem:[#allocation5 + $0x2c] sm:$0xf]
    %v105 = vld [vmem:[#allocation5 + $0x30] sm:$0xf]
    %v106 = vld [vmem:[#allocation5 + $0x34] sm:$0xf]
    %v107 = vld [vmem:[#allocation5 + $0x38] sm:$0xf]
    %v108 = vld [vmem:[#allocation5 + $0x3c] sm:$0xf]
    %v125 = vunpack.c.l.b16 %v93
    %v126 = vunpack.c.l.b16 %v94
    %v127 = vunpack.c.l.b16 %v95
    %v128 = vunpack.c.l.b16 %v96
    %v129 = vunpack.c.l.b16 %v97
    %v130 = vunpack.c.l.b16 %v98
    %v131 = vunpack.c.l.b16 %v99
    %v132 = vunpack.c.l.b16 %v100
    %v133 = vunpack.c.l.b16 %v101
    %v134 = vunpack.c.l.b16 %v102
    %v135 = vunpack.c.l.b16 %v103
    %v136 = vunpack.c.l.b16 %v104
    %v137 = vunpack.c.l.b16 %v105
    %v138 = vunpack.c.l.b16 %v106
    %v139 = vunpack.c.l.b16 %v107
    %v140 = vunpack.c.l.b16 %v108
    %v141 = vpack.c.b16 %v126, %v125
    %v142 = vpack.c.b16 %v128, %v127
    %v143 = vpack.c.b16 %v130, %v129
    %v144 = vpack.c.b16 %v132, %v131
    %v145 = vpack.c.b16 %v134, %v133
    %v146 = vpack.c.b16 %v136, %v135
    %v147 = vpack.c.b16 %v138, %v137
    %v148 = vpack.c.b16 %v140, %v139
    %157 = vmatprep.subr.bf16.mxu0 0
    %158 = vmatpush1.bf16.xpose.msra.mxu0 %v141
    %159 = vmatprep.subr.bf16.mxu0 0
    %160 = vmatpush1.bf16.xpose.msra.mxu0 %v142
    %161 = vmatprep.subr.bf16.mxu0 0
    %162 = vmatpush1.bf16.xpose.msra.mxu0 %v143
    %163 = vmatprep.subr.bf16.mxu0 0
    %164 = vmatpush1.bf16.xpose.msra.mxu0 %v144
    %165 = vmatprep.subr.bf16.mxu0 0
    %166 = vmatpush1.bf16.xpose.msra.mxu0 %v145
    %167 = vmatprep.subr.bf16.mxu0 0
    %168 = vmatpush1.bf16.xpose.msra.mxu0 %v146
    %169 = vmatprep.subr.bf16.mxu0 0
    %170 = vmatpush1.bf16.xpose.msra.mxu0 %v147
    %171 = vmatprep.subr.bf16.mxu0 0
    %172 = vmatpush1.bf16.xpose.msra.mxu0 %v148
    %173 = vmatprep.subr.bf16.mxu0 0
    %174 = vmatpush1.bf16.xpose.msra.mxu0 0
    %175 = vmatprep.subr.bf16.mxu0 0
    %176 = vmatpush1.bf16.xpose.msra.mxu0 0
    %177 = vmatprep.subr.bf16.mxu0 0
    %178 = vmatpush1.bf16.xpose.msra.mxu0 0
    %179 = vmatprep.subr.bf16.mxu0 0
    %180 = vmatpush1.bf16.xpose.msra.mxu0 0
    %181 = vmatprep.subr.bf16.mxu0 0
    %182 = vmatpush1.bf16.xpose.msra.mxu0 0
    %183 = vmatprep.subr.bf16.mxu0 0
    %184 = vmatpush1.bf16.xpose.msra.mxu0 0
    %185 = vmatprep.subr.bf16.mxu0 0
    %186 = vmatpush1.bf16.xpose.msra.mxu0 0
    %187 = vmatprep.subr.bf16.mxu0 0
    %188 = vmatpush1.bf16.xpose.msra.mxu0 0
    %189 = vmatprep.mubr.bf16.mxu0 0
    %190 = vmatmul.mubr.bf16.gmra.mrb[0].mxu0 %v92
    %v191 = vpop.f32.mrb[0].mxu0
    %v192 = vadd.f32 0.0, %v191
    %v193 = vpop.f32.mrb[0].mxu0
    %v194 = vpop.f32.mrb[0].mxu0
    %v195 = vpop.f32.mrb[0].mxu0
    %196 = vdwg.mxu0
    %v198 = vlaneseq
    %v199 = vshrl.u32 %v198, 7
    %v200 = vsub.s32 0, %v199
    %v201 = vrot.slane %v66, %v200
    %v203 = vmul.f32 %v201, %v192
    %v220 = vunpack.c.l.b16 %v67
    %v221 = vunpack.c.l.b16 %v68
    %v222 = vunpack.c.l.b16 %v69
    %v223 = vunpack.c.l.b16 %v70
    %v224 = vunpack.c.l.b16 %v71
    %v225 = vunpack.c.l.b16 %v72
    %v226 = vunpack.c.l.b16 %v73
    %v227 = vunpack.c.l.b16 %v74
    %v228 = vunpack.c.l.b16 %v75
    %v229 = vunpack.c.l.b16 %v76
    %v230 = vunpack.c.l.b16 %v77
    %v231 = vunpack.c.l.b16 %v78
    %v232 = vunpack.c.l.b16 %v79
    %v233 = vunpack.c.l.b16 %v80
    %v234 = vunpack.c.l.b16 %v81
    %v235 = vunpack.c.l.b16 %v82
    %v236 = vpack.c.b16 %v221, %v220
    %v237 = vpack.c.b16 %v223, %v222
    %v238 = vpack.c.b16 %v225, %v224
    %v239 = vpack.c.b16 %v227, %v226
    %v240 = vpack.c.b16 %v229, %v228
    %v241 = vpack.c.b16 %v231, %v230
    %v242 = vpack.c.b16 %v233, %v232
    %v243 = vpack.c.b16 %v235, %v234
    %252 = vmatprep.subr.bf16.mxu0 0
    %253 = vmatpush1.bf16.xpose.msra.mxu0 %v236
    %254 = vmatprep.subr.bf16.mxu0 0
    %255 = vmatpush1.bf16.xpose.msra.mxu0 %v237
    %256 = vmatprep.subr.bf16.mxu0 0
    %257 = vmatpush1.bf16.xpose.msra.mxu0 %v238
    %258 = vmatprep.subr.bf16.mxu0 0
    %259 = vmatpush1.bf16.xpose.msra.mxu0 %v239
    %260 = vmatprep.subr.bf16.mxu0 0
    %261 = vmatpush1.bf16.xpose.msra.mxu0 %v240
    %262 = vmatprep.subr.bf16.mxu0 0
    %263 = vmatpush1.bf16.xpose.msra.mxu0 %v241
    %264 = vmatprep.subr.bf16.mxu0 0
    %265 = vmatpush1.bf16.xpose.msra.mxu0 %v242
    %266 = vmatprep.subr.bf16.mxu0 0
    %267 = vmatpush1.bf16.xpose.msra.mxu0 %v243
    %268 = vmatprep.subr.bf16.mxu0 0
    %269 = vmatpush1.bf16.xpose.msra.mxu0 0
    %270 = vmatprep.subr.bf16.mxu0 0
    %271 = vmatpush1.bf16.xpose.msra.mxu0 0
    %272 = vmatprep.subr.bf16.mxu0 0
    %273 = vmatpush1.bf16.xpose.msra.mxu0 0
    %274 = vmatprep.subr.bf16.mxu0 0
    %275 = vmatpush1.bf16.xpose.msra.mxu0 0
    %276 = vmatprep.subr.bf16.mxu0 0
    %277 = vmatpush1.bf16.xpose.msra.mxu0 0
    %278 = vmatprep.subr.bf16.mxu0 0
    %279 = vmatpush1.bf16.xpose.msra.mxu0 0
    %280 = vmatprep.subr.bf16.mxu0 0
    %281 = vmatpush1.bf16.xpose.msra.mxu0 0
    %282 = vmatprep.subr.bf16.mxu0 0
    %283 = vmatpush1.bf16.xpose.msra.mxu0 0
    %284 = vmatprep.mubr.bf16.mxu0 0
    %285 = vmatmul.mubr.bf16.gmra.mrb[0].mxu0 %v65
    %v286 = vpop.f32.mrb[0].mxu0
    %v287 = vadd.f32 %v203, %v286
    %v288 = vpop.f32.mrb[0].mxu0
    %v289 = vpop.f32.mrb[0].mxu0
    %v290 = vpop.f32.mrb[0].mxu0
    %291 = vdwg.mxu0
    %v292 = vld [vmem:[#allocation7] sm:$0xff]
    %v293 = vadd.f32 %v292, %v287
    %294 = vst [vmem:[#allocation7] sm:$0xff] %v293
    // Predicated region
    $region38: #{noisy_linear_prepared.1} parent=1 // pred_check
      _
    $region39: #{noisy_linear_prepared.1} parent=1 // pred_check_branch
      %296 = sbr.rel (0) target = $region41
    $region40: #{noisy_linear_prepared.1} parent=1 // pred_region
      %s298 = ssub.s32 128, 128
      %299 = vsyncadd [#allocation4], %s298
      %s301 = sshll.u32 [#allocation7], 4
      %s302 = int_to_ptr.vmem [resolvable:$true] %s301
      %304 = dma.vmem_to_hbm [thread:$0]  %s302, 128, %s6, [#allocation4]
    $region41: #{noisy_linear_prepared.1} parent=1 // pred_fallthru
      _
    // Predicated region
    $region42: #{noisy_linear_prepared.1} parent=1 // pred_check
      _
    $region43: #{noisy_linear_prepared.1} parent=1 // pred_check_branch
      %306 = sbr.rel (0) target = $region45
    $region44: #{noisy_linear_prepared.1} parent=1 // pred_region
      %307 = dma.done [#allocation4], 128
    $region45: #{noisy_linear_prepared.1} parent=1 // pred_fallthru
      _
    %308 = vsyncpa [#allocation3], 1
    %309 = vsyncpa [#allocation6], 1
    %310 = vsyncpa [#allocation4], 1

</llo_original>
